<compile_context>
chip_gen: v6e
topology: v6e:2x2x1
jax: 0.10.0
libtpu: 0.0.40
codegen_flags: <defaults>
</compile_context>

<pallas_src>
import jax
import jax.numpy as jnp
from jax import lax
from jax.experimental import pallas as pl
from jax.experimental.pallas import tpu as pltpu


def _round_up(x, m):
    return (x + m - 1) // m * m


def attn_decoder_kernel(tok_ref, emb_tab_ref, hid0_ref, enc_comb_ref,
                        w_cat_ref, w_x_ref, out_w_ref, bias_ref, out_ref):
    T = out_ref.shape[0]
    L, H = enc_comb_ref.shape
    V = out_w_ref.shape[1]
    Wp = out_ref.shape[-1]

    # Hoisted, VMEM-resident operands (read once for all T steps).
    w_cat = w_cat_ref[...]                      # (2H, >=L+4H) bf16
    w_x = w_x_ref[...]                          # (H,  >=3H)   bf16
    out_w = out_w_ref[...]                      # (H,  V)      bf16
    enc_comb = enc_comb_ref[...]                # (L,  H)      bf16  (= enc @ comb_wa)

    attn_b = bias_ref[0:1, 0:L]
    comb_b = bias_ref[0:1, L:L + H]
    b_r = bias_ref[1:2, 0:H]                    # b_ir + b_hr
    b_z = bias_ref[1:2, H:2 * H]                # b_iz + b_hz
    b_in = bias_ref[1:2, 2 * H:3 * H]
    b_hn = bias_ref[1:2, 3 * H:4 * H]
    out_b = bias_ref[2:3, 0:V]

    def step(t, carry):
        hid_f32, hid_bf16 = carry               # (1, H) each, carried in vregs

        tok = tok_ref[t]                         # SMEM scalar token id
        emb = emb_tab_ref[pl.ds(tok, 1), :].astype(jnp.bfloat16)   # (1, H); dropout = identity (eval)

        # Fused projection: [attn logits | emb@comb_we | hid@w_hr | hid@w_hz | hid@w_hn]
        lhs = jnp.concatenate([emb, hid_bf16], axis=1)             # (1, 2H)
        proj = jnp.dot(lhs, w_cat, preferred_element_type=jnp.float32)

        # attn_weights = softmax(attn(cat(embedded, hidden)))
        logits_a = proj[:, 0:L] + attn_b
        m = jnp.max(logits_a, axis=-1, keepdims=True)
        e = jnp.exp(logits_a - m)
        attn_w = e * pl.reciprocal(jnp.sum(e, axis=-1, keepdims=True), approx=True)

        # x = relu(attn_combine(cat(embedded, attn_w @ enc)))  with enc@comb_wa prefolded
        ctx = jnp.dot(attn_w.astype(jnp.bfloat16), enc_comb,
                      preferred_element_type=jnp.float32)          # (1, H)
        x = jnp.maximum(proj[:, L:L + H] + ctx + comb_b, 0.0)

        # GRU cell (PyTorch gate order r, z, n) — single fused x-side matmul
        x_proj = jnp.dot(x.astype(jnp.bfloat16), w_x,
                         preferred_element_type=jnp.float32)       # (1, >=3H)
        r = jax.nn.sigmoid(x_proj[:, 0:H] + b_r + proj[:, L + H:L + 2 * H])
        z = jax.nn.sigmoid(x_proj[:, H:2 * H] + b_z + proj[:, L + 2 * H:L + 3 * H])
        n = jnp.tanh(x_proj[:, 2 * H:3 * H] + b_in
                     + r * (proj[:, L + 3 * H:L + 4 * H] + b_hn))
        h_new = (1.0 - z) * n + z * hid_f32
        h_new_bf16 = h_new.astype(jnp.bfloat16)

        # log_softmax(out(h_new))
        logits = jnp.dot(h_new_bf16, out_w, preferred_element_type=jnp.float32) + out_b
        m2 = jnp.max(logits, axis=-1, keepdims=True)
        lse = jnp.log(jnp.sum(jnp.exp(logits - m2), axis=-1, keepdims=True)) + m2

        # Single lane-dense 128-wide store: [logp | h_new | attn_w | 0-pad]
        parts = [logits - lse, h_new, attn_w]
        pad = Wp - (V + H + L)
        if pad:
            parts.append(jnp.zeros((1, pad), jnp.float32))
        out_ref[t] = jnp.concatenate(parts, axis=-1)

        return h_new, h_new_bf16

    hid0 = hid0_ref[...]
    lax.fori_loop(0, T, step, (hid0, hid0.astype(jnp.bfloat16)),
                  unroll=(T <= 16))


_VMEM = pl.BlockSpec(memory_space=pltpu.MemorySpace.VMEM)
_SMEM = pl.BlockSpec(memory_space=pltpu.MemorySpace.SMEM)


def attn_decoder_decode(prep, token_ids, hidden, encoder_outputs):
    """Run T teacher-forced decode steps in a single-launch Pallas kernel.

    token_ids: (T,) int32; hidden: (1, 1, H) f32; encoder_outputs: (L, H) f32.
    Returns (logp (T, V), hiddens (T, H), attn_weights (T, L)), all f32.
    """
    H = hidden.shape[-1]
    L = encoder_outputs.shape[0]
    V = prep["out_w"].shape[-1]
    T = int(token_ids.shape[0])
    Wp = _round_up(V + H + L, 128)

    hid0 = hidden.reshape(1, H).astype(jnp.float32)
    # enc @ comb_wa folded once — attn_applied itself is never a module output.
    enc_comb = jnp.dot(encoder_outputs.astype(jnp.bfloat16), prep["comb_wa"],
                       preferred_element_type=jnp.float32).astype(jnp.bfloat16)

    packed = pl.pallas_call(
        attn_decoder_kernel,
        out_shape=jax.ShapeDtypeStruct((T, 1, Wp), jnp.float32),
        in_specs=[_SMEM, _VMEM, _VMEM, _VMEM, _VMEM, _VMEM, _VMEM, _VMEM],
        out_specs=_VMEM,
    )(jnp.asarray(token_ids, jnp.int32), prep["embedding"], hid0, enc_comb,
      prep["w_cat"], prep["w_x"], prep["out_w"], prep["bias"])

    packed = packed[:, 0, :]
    return packed[:, :V], packed[:, V:V + H], packed[:, V + H:V + H + L]


def attn_decoder_forward(prep, input_idx, hidden, encoder_outputs):
    """Single decode step matching AttnDecoderRNN.forward (eval mode)."""
    H = hidden.shape[-1]
    token = jnp.asarray([input_idx], dtype=jnp.int32)
    logp, h, attn_w = attn_decoder_decode(prep, token, hidden, encoder_outputs)
    return logp, h.reshape(1, 1, H), attn_w


def make_params(key, hidden_size, output_size, max_length):
    H, V, L = hidden_size, output_size, max_length
    ks = jax.random.split(key, 16)
    u = lambda k, shape, s=0.1: (jax.random.uniform(k, shape, jnp.float32) * 2.0 - 1.0) * s
    p = {}
    p["embedding"] = u(ks[0], (V, H), 1.0)
    # attn: Linear(2H -> L); torch weight (L, 2H) pre-transposed & split
    p["attn_we"] = u(ks[1], (H, L))
    p["attn_wh"] = u(ks[2], (H, L))
    p["attn_b"] = u(ks[3], (1, L))
    # attn_combine: Linear(2H -> H)
    p["comb_we"] = u(ks[4], (H, H))
    p["comb_wa"] = u(ks[5], (H, H))
    p["comb_b"] = u(ks[6], (1, H))
    # GRU(H -> H): weight_ih (3H,H), weight_hh (3H,H) split per-gate & transposed
    p["w_ir"], p["w_iz"], p["w_in"] = u(ks[7], (H, H)), u(ks[8], (H, H)), u(ks[9], (H, H))
    p["w_hr"], p["w_hz"], p["w_hn"] = u(ks[10], (H, H)), u(ks[11], (H, H)), u(ks[12], (H, H))
    p["b_ir"] = u(ks[13], (1, H)); p["b_iz"] = u(ks[13], (1, H)) * 0.5; p["b_in"] = u(ks[13], (1, H)) * 0.25
    p["b_hr"] = u(ks[14], (1, H)); p["b_hz"] = u(ks[14], (1, H)) * 0.5; p["b_hn"] = u(ks[14], (1, H)) * 0.25
    # out: Linear(H -> V)
    p["out_w"] = u(ks[15], (H, V))
    p["out_b"] = jnp.zeros((1, V), jnp.float32)
    return p


def prepare_params(p):
    """Fuse / pack / bf16-cast raw per-layer params into the kernel layout (done once)."""
    bf16 = jnp.bfloat16
    L = p["attn_b"].shape[-1]
    H = p["comb_b"].shape[-1]
    V = p["out_b"].shape[-1]

    def _pad_lanes(x, mult=128):
        w = x.shape[-1]
        return jnp.pad(x, ((0, 0), (0, _round_up(w, mult) - w)))

    # W_cat (2H, L+4H):  emb rows -> [attn_we | comb_we |  0   |  0   |  0  ]
    #                    hid rows -> [attn_wh |    0    | w_hr | w_hz | w_hn]
    zH = jnp.zeros((H, H), jnp.float32)
    top = jnp.concatenate([p["attn_we"], p["comb_we"], zH, zH, zH], axis=1)
    bot = jnp.concatenate([p["attn_wh"], zH, p["w_hr"], p["w_hz"], p["w_hn"]], axis=1)
    w_cat = _pad_lanes(jnp.concatenate([top, bot], axis=0))

    # x-side GRU weights fused: [w_ir | w_iz | w_in]
    w_x = _pad_lanes(jnp.concatenate([p["w_ir"], p["w_iz"], p["w_in"]], axis=1))

    # Packed biases (3, BW):
    #   row 0: [attn_b | comb_b]
    #   row 1: [b_ir+b_hr | b_iz+b_hz | b_in | b_hn]
    #   row 2: [out_b]
    BW = _round_up(max(L + H, 4 * H, V), 128)

    def _row(x):
        return jnp.pad(x, ((0, 0), (0, BW - x.shape[-1])))

    bias = jnp.concatenate([
        _row(jnp.concatenate([p["attn_b"], p["comb_b"]], axis=1)),
        _row(jnp.concatenate([p["b_ir"] + p["b_hr"], p["b_iz"] + p["b_hz"],
                              p["b_in"], p["b_hn"]], axis=1)),
        _row(p["out_b"]),
    ], axis=0).astype(jnp.float32)

    return {
        # Stored f32 (values bf16-rounded): the dynamic single-row gather stays
        # on a 32-bit layout and the in-kernel bf16 cast is lossless.
        "embedding": p["embedding"].astype(bf16).astype(jnp.float32),
        "w_cat": w_cat.astype(bf16),
        "w_x": w_x.astype(bf16),
        "comb_wa": p["comb_wa"].astype(bf16),
        "out_w": p["out_w"].astype(bf16),
        "bias": bias,
    }


def _r16(a):
    """Round through bf16 (weights are stored bf16 in the kernel)."""
    return a.astype(jnp.bfloat16).astype(jnp.float32)


def reference_forward(params, input_idx, hidden, encoder_outputs):
    """Pure-JAX mirror of the PyTorch forward (eval mode), with the same bf16
    weight rounding as the kernel, for verification."""
    H = hidden.shape[-1]
    embedded = _r16(params["embedding"])[input_idx].reshape(1, H)
    hid0 = hidden.reshape(1, H)
    cat1 = jnp.concatenate([embedded, hid0], axis=1)
    attn_logits = cat1 @ jnp.concatenate([_r16(params["attn_we"]), _r16(params["attn_wh"])], 0) + params["attn_b"]
    attn_w = jax.nn.softmax(attn_logits, axis=1)
    attn_applied = attn_w @ _r16(encoder_outputs)
    cat2 = jnp.concatenate([embedded, attn_applied], axis=1)
    x = jax.nn.relu(cat2 @ jnp.concatenate([_r16(params["comb_we"]), _r16(params["comb_wa"])], 0) + params["comb_b"])
    r = jax.nn.sigmoid(x @ _r16(params["w_ir"]) + params["b_ir"] + hid0 @ _r16(params["w_hr"]) + params["b_hr"])
    z = jax.nn.sigmoid(x @ _r16(params["w_iz"]) + params["b_iz"] + hid0 @ _r16(params["w_hz"]) + params["b_hz"])
    n = jnp.tanh(x @ _r16(params["w_in"]) + params["b_in"] + r * (hid0 @ _r16(params["w_hn"]) + params["b_hn"]))
    h_new = (1.0 - z) * n + z * hid0
    logp = jax.nn.log_softmax(h_new @ _r16(params["out_w"]) + params["out_b"], axis=1)
    return logp, h_new.reshape(1, 1, H), attn_w


if __name__ == "__main__":
    HIDDEN = 32
    OUTPUT = 64   # vocab size
    MAXLEN = 8
    STEPS = 4

    key = jax.random.PRNGKey(0)
    pkey, hkey, ekey = jax.random.split(key, 3)
    params = make_params(pkey, HIDDEN, OUTPUT, MAXLEN)
    prep = prepare_params(params)

    hidden = jax.random.normal(hkey, (1, 1, HIDDEN), jnp.float32) * 0.1
    encoder_outputs = jax.random.normal(ekey, (MAXLEN, HIDDEN), jnp.float32) * 0.1

    # --- single step (module-faithful forward) ---
    input_idx = 5
    logp, h_new, attn_w = attn_decoder_forward(prep, input_idx, hidden, encoder_outputs)
    jax.block_until_ready((logp, h_new, attn_w))

    logp_r, h_r, attn_r = reference_forward(params, input_idx, hidden, encoder_outputs)
    assert jnp.allclose(logp, logp_r, atol=2e-2), "log_softmax output mismatch"
    assert jnp.allclose(h_new, h_r, atol=2e-2), "hidden state mismatch"
    assert jnp.allclose(attn_w, attn_r, atol=2e-2), "attention weights mismatch"

    # --- multi-step teacher-forced decode: one launch, in-kernel step loop ---
    token_ids = jnp.array([5, 17, 3, 42], dtype=jnp.int32)
    logp_seq, hid_seq, attn_seq = attn_decoder_decode(prep, token_ids, hidden, encoder_outputs)
    jax.block_until_ready((logp_seq, hid_seq, attn_seq))

    h_ref = hidden
    for t in range(STEPS):
        lp_r, h_ref, aw_r = reference_forward(params, int(token_ids[t]), h_ref, encoder_outputs)
        assert jnp.allclose(logp_seq[t:t + 1], lp_r, atol=2e-2), f"step {t} logp mismatch"
        assert jnp.allclose(hid_seq[t:t + 1], h_ref.reshape(1, HIDDEN), atol=2e-2), f"step {t} hidden mismatch"
        assert jnp.allclose(attn_seq[t:t + 1], aw_r, atol=2e-2), f"step {t} attn mismatch"

    print("KERNEL_OK")
</pallas_src>

<mosaic_0001>
module attributes {stable_mosaic.version = 11 : i64} {
  func.func @attn_decoder_kernel(%arg0: memref<1xi32, #tpu.memory_space<smem>>, %arg1: memref<64x32xf32, #tpu.memory_space<vmem>>, %arg2: memref<1x32xf32, #tpu.memory_space<vmem>>, %arg3: memref<8x32xbf16, #tpu.memory_space<vmem>>, %arg4: memref<64x256xbf16, #tpu.memory_space<vmem>>, %arg5: memref<32x128xbf16, #tpu.memory_space<vmem>>, %arg6: memref<32x64xbf16, #tpu.memory_space<vmem>>, %arg7: memref<3x128xf32, #tpu.memory_space<vmem>>, %arg8: memref<1x1x128xf32, #tpu.memory_space<vmem>>) attributes {dimension_semantics = [], scalar_prefetch = 0 : i64, scratch_operands = 0 : i64, tpu.core_type = #tpu.core_type<tc>} {
    %c0 = arith.constant 0 : index
    %c0_0 = arith.constant 0 : index
    %0 = vector.load %arg4[%c0, %c0_0] : memref<64x256xbf16, #tpu.memory_space<vmem>>, vector<64x256xbf16>
    %c0_1 = arith.constant 0 : index
    %c0_2 = arith.constant 0 : index
    %1 = vector.load %arg5[%c0_1, %c0_2] : memref<32x128xbf16, #tpu.memory_space<vmem>>, vector<32x128xbf16>
    %c0_3 = arith.constant 0 : index
    %c0_4 = arith.constant 0 : index
    %2 = vector.load %arg6[%c0_3, %c0_4] : memref<32x64xbf16, #tpu.memory_space<vmem>>, vector<32x64xbf16>
    %c0_5 = arith.constant 0 : index
    %c0_6 = arith.constant 0 : index
    %3 = vector.load %arg3[%c0_5, %c0_6] : memref<8x32xbf16, #tpu.memory_space<vmem>>, vector<8x32xbf16>
    %c0_7 = arith.constant 0 : index
    %c0_8 = arith.constant 0 : index
    %4 = vector.load %arg7[%c0_7, %c0_8] : memref<3x128xf32, #tpu.memory_space<vmem>>, vector<1x8xf32>
    %c0_9 = arith.constant 0 : index
    %c8 = arith.constant 8 : index
    %5 = vector.load %arg7[%c0_9, %c8] : memref<3x128xf32, #tpu.memory_space<vmem>>, vector<1x32xf32>
    %c1 = arith.constant 1 : index
    %c0_10 = arith.constant 0 : index
    %6 = vector.load %arg7[%c1, %c0_10] : memref<3x128xf32, #tpu.memory_space<vmem>>, vector<1x32xf32>
    %c1_11 = arith.constant 1 : index
    %c32 = arith.constant 32 : index
    %7 = vector.load %arg7[%c1_11, %c32] : memref<3x128xf32, #tpu.memory_space<vmem>>, vector<1x32xf32>
    %c1_12 = arith.constant 1 : index
    %c64 = arith.constant 64 : index
    %8 = vector.load %arg7[%c1_12, %c64] : memref<3x128xf32, #tpu.memory_space<vmem>>, vector<1x32xf32>
    %c1_13 = arith.constant 1 : index
    %c96 = arith.constant 96 : index
    %9 = vector.load %arg7[%c1_13, %c96] : memref<3x128xf32, #tpu.memory_space<vmem>>, vector<1x32xf32>
    %c2 = arith.constant 2 : index
    %c0_14 = arith.constant 0 : index
    %10 = vector.load %arg7[%c2, %c0_14] : memref<3x128xf32, #tpu.memory_space<vmem>>, vector<1x64xf32>
    %c0_15 = arith.constant 0 : index
    %c0_16 = arith.constant 0 : index
    %11 = vector.load %arg2[%c0_15, %c0_16] : memref<1x32xf32, #tpu.memory_space<vmem>>, vector<1x32xf32>
    %12 = arith.truncf %11 : vector<1x32xf32> to vector<1x32xbf16>
    %c0_i32 = arith.constant 0 : i32
    %13 = arith.index_cast %c0_i32 : i32 to index
    %14 = memref.load %arg0[%13] : memref<1xi32, #tpu.memory_space<smem>>
    %15 = arith.index_cast %14 : i32 to index
    %c0_17 = arith.constant 0 : index
    %16 = vector.load %arg1[%15, %c0_17] : memref<64x32xf32, #tpu.memory_space<vmem>>, vector<1x32xf32>
    %17 = arith.truncf %16 : vector<1x32xf32> to vector<1x32xbf16>
    %18 = tpu.concatenate %17, %12 in 1 : vector<1x32xbf16>, vector<1x32xbf16> -> vector<1x64xbf16>
    %cst = arith.constant dense<0.000000e+00> : vector<1x256xf32>
    %19 = tpu.matmul %18, %0, %cst {dimension_numbers = #tpu.dot_dimension_numbers<[1], [0], [0], [1], [0, 0, 1, 1], [], []>} : vector<1x64xbf16>, vector<64x256xbf16>, vector<1x256xf32> -> vector<1x256xf32>
    %20 = vector.extract_strided_slice %19 {offsets = [0, 0], sizes = [1, 8], strides = [1, 1]} : vector<1x256xf32> to vector<1x8xf32>
    %21 = arith.addf %20, %4 : vector<1x8xf32>
    %cst_18 = arith.constant dense<0xFF800000> : vector<1xf32>
    %22 = vector.multi_reduction <maximumf>, %21, %cst_18 [1] : vector<1x8xf32> to vector<1xf32>
    %23 = vector.shape_cast %22 : vector<1xf32> to vector<1x1xf32>
    %24 = vector.broadcast %23 : vector<1x1xf32> to vector<1x8xf32>
    %25 = arith.subf %21, %24 : vector<1x8xf32>
    %26 = math.exp %25 : vector<1x8xf32>
    %cst_19 = arith.constant dense<0.000000e+00> : vector<1xf32>
    %27 = vector.multi_reduction <add>, %26, %cst_19 [1] : vector<1x8xf32> to vector<1xf32>
    %28 = vector.shape_cast %27 : vector<1xf32> to vector<1x1xf32>
    %29 = tpu.reciprocal %28 {approx = true} : vector<1x1xf32> -> vector<1x1xf32>
    %30 = vector.broadcast %29 : vector<1x1xf32> to vector<1x8xf32>
    %31 = arith.mulf %26, %30 : vector<1x8xf32>
    %32 = arith.truncf %31 : vector<1x8xf32> to vector<1x8xbf16>
    %cst_20 = arith.constant dense<0.000000e+00> : vector<1x32xf32>
    %33 = tpu.matmul %32, %3, %cst_20 {dimension_numbers = #tpu.dot_dimension_numbers<[1], [0], [0], [1], [0, 0, 1, 1], [], []>} : vector<1x8xbf16>, vector<8x32xbf16>, vector<1x32xf32> -> vector<1x32xf32>
    %34 = vector.extract_strided_slice %19 {offsets = [0, 8], sizes = [1, 32], strides = [1, 1]} : vector<1x256xf32> to vector<1x32xf32>
    %35 = arith.addf %34, %33 : vector<1x32xf32>
    %36 = arith.addf %35, %5 : vector<1x32xf32>
    %cst_21 = arith.constant 0.000000e+00 : f32
    %37 = vector.broadcast %cst_21 : f32 to vector<1x32xf32>
    %38 = arith.maximumf %36, %37 : vector<1x32xf32>
    %39 = arith.truncf %38 : vector<1x32xf32> to vector<1x32xbf16>
    %cst_22 = arith.constant dense<0.000000e+00> : vector<1x128xf32>
    %40 = tpu.matmul %39, %1, %cst_22 {dimension_numbers = #tpu.dot_dimension_numbers<[1], [0], [0], [1], [0, 0, 1, 1], [], []>} : vector<1x32xbf16>, vector<32x128xbf16>, vector<1x128xf32> -> vector<1x128xf32>
    %41 = vector.extract_strided_slice %40 {offsets = [0, 0], sizes = [1, 32], strides = [1, 1]} : vector<1x128xf32> to vector<1x32xf32>
    %42 = arith.addf %41, %6 : vector<1x32xf32>
    %43 = vector.extract_strided_slice %19 {offsets = [0, 40], sizes = [1, 32], strides = [1, 1]} : vector<1x256xf32> to vector<1x32xf32>
    %44 = arith.addf %42, %43 : vector<1x32xf32>
    %45 = arith.negf %44 : vector<1x32xf32>
    %46 = math.exp %45 : vector<1x32xf32>
    %cst_23 = arith.constant 1.000000e+00 : f32
    %47 = vector.broadcast %cst_23 : f32 to vector<1x32xf32>
    %48 = arith.addf %47, %46 : vector<1x32xf32>
    %49 = arith.divf %47, %48 : vector<1x32xf32>
    %50 = vector.extract_strided_slice %40 {offsets = [0, 32], sizes = [1, 32], strides = [1, 1]} : vector<1x128xf32> to vector<1x32xf32>
    %51 = arith.addf %50, %7 : vector<1x32xf32>
    %52 = vector.extract_strided_slice %19 {offsets = [0, 72], sizes = [1, 32], strides = [1, 1]} : vector<1x256xf32> to vector<1x32xf32>
    %53 = arith.addf %51, %52 : vector<1x32xf32>
    %54 = arith.negf %53 : vector<1x32xf32>
    %55 = math.exp %54 : vector<1x32xf32>
    %cst_24 = arith.constant 1.000000e+00 : f32
    %56 = vector.broadcast %cst_24 : f32 to vector<1x32xf32>
    %57 = arith.addf %56, %55 : vector<1x32xf32>
    %58 = arith.divf %56, %57 : vector<1x32xf32>
    %59 = vector.extract_strided_slice %40 {offsets = [0, 64], sizes = [1, 32], strides = [1, 1]} : vector<1x128xf32> to vector<1x32xf32>
    %60 = arith.addf %59, %8 : vector<1x32xf32>
    %61 = vector.extract_strided_slice %19 {offsets = [0, 104], sizes = [1, 32], strides = [1, 1]} : vector<1x256xf32> to vector<1x32xf32>
    %62 = arith.addf %61, %9 : vector<1x32xf32>
    %63 = arith.mulf %49, %62 : vector<1x32xf32>
    %64 = arith.addf %60, %63 : vector<1x32xf32>
    %65 = math.tanh %64 : vector<1x32xf32>
    %cst_25 = arith.constant 1.000000e+00 : f32
    %66 = vector.broadcast %cst_25 : f32 to vector<1x32xf32>
    %67 = arith.subf %66, %58 : vector<1x32xf32>
    %68 = arith.mulf %67, %65 : vector<1x32xf32>
    %69 = arith.mulf %58, %11 : vector<1x32xf32>
    %70 = arith.addf %68, %69 : vector<1x32xf32>
    %71 = arith.truncf %70 : vector<1x32xf32> to vector<1x32xbf16>
    %cst_26 = arith.constant dense<0.000000e+00> : vector<1x64xf32>
    %72 = tpu.matmul %71, %2, %cst_26 {dimension_numbers = #tpu.dot_dimension_numbers<[1], [0], [0], [1], [0, 0, 1, 1], [], []>} : vector<1x32xbf16>, vector<32x64xbf16>, vector<1x64xf32> -> vector<1x64xf32>
    %73 = arith.addf %72, %10 : vector<1x64xf32>
    %cst_27 = arith.constant dense<0xFF800000> : vector<1xf32>
    %74 = vector.multi_reduction <maximumf>, %73, %cst_27 [1] : vector<1x64xf32> to vector<1xf32>
    %75 = vector.shape_cast %74 : vector<1xf32> to vector<1x1xf32>
    %76 = vector.broadcast %75 : vector<1x1xf32> to vector<1x64xf32>
    %77 = arith.subf %73, %76 : vector<1x64xf32>
    %78 = math.exp %77 : vector<1x64xf32>
    %cst_28 = arith.constant dense<0.000000e+00> : vector<1xf32>
    %79 = vector.multi_reduction <add>, %78, %cst_28 [1] : vector<1x64xf32> to vector<1xf32>
    %80 = vector.shape_cast %79 : vector<1xf32> to vector<1x1xf32>
    %81 = math.log %80 : vector<1x1xf32>
    %82 = arith.addf %81, %75 : vector<1x1xf32>
    %83 = vector.broadcast %82 : vector<1x1xf32> to vector<1x64xf32>
    %84 = arith.subf %73, %83 : vector<1x64xf32>
    %cst_29 = arith.constant 0.000000e+00 : f32
    %85 = vector.broadcast %cst_29 : f32 to vector<1x24xf32>
    %86 = tpu.concatenate %84, %70, %31, %85 in 1 : vector<1x64xf32>, vector<1x32xf32>, vector<1x8xf32>, vector<1x24xf32> -> vector<1x128xf32>
    %87 = arith.index_cast %c0_i32 : i32 to index
    %c0_30 = arith.constant 0 : index
    %c0_31 = arith.constant 0 : index
    %88 = vector.load %arg8[%87, %c0_30, %c0_31] : memref<1x1x128xf32, #tpu.memory_space<vmem>>, vector<1x1x128xf32>
    %89 = vector.shape_cast %88 : vector<1x1x128xf32> to vector<1x128xf32>
    %90 = vector.shape_cast %86 : vector<1x128xf32> to vector<1x1x128xf32>
    tpu.vector_store %arg8[%87, %c0_30, %c0_31], %90 {strides = array<i32>} : memref<1x1x128xf32, #tpu.memory_space<vmem>>, vector<1x1x128xf32>,
    %c1_i32 = arith.constant 1 : i32
    return
  }
}

</mosaic_0001>

<llo_original>
// kernel: tpu_custom_call.1
$region0: #{tpu_custom_call.1}
  #allocation0 [shape = 'u32[]', space=smem, size = 0x4, offset = 0x4, fixed_abs, tag = 'smem constant byte address 0x4 - core index']
  #allocation1 [shape = 'u32[144,128]{1,0:T(1,128)}', space=vmem, size = 0x12000, scoped, tag = 'internal scratch']
  #allocation2 [shape = 's32[1]{0:T(128)S(6)}', space=smem, size = 0x200, scoped, tag = 'scoped memory for tpu_custom_call.1']
  %s0 = inlined_call_operand.<no memory space> [shape: s32[1], index: 0, kind: input, shape index: {}]
  %s1 = inlined_call_operand.vmem [shape: f32[64,32], index: 1, kind: input, shape index: {}]
  %s2 = inlined_call_operand.vmem [shape: f32[1,32], index: 2, kind: input, shape index: {}]
  %s3 = inlined_call_operand.vmem [shape: bf16[8,32], index: 3, kind: input, shape index: {}]
  %s4 = inlined_call_operand.vmem [shape: bf16[64,256], index: 4, kind: input, shape index: {}]
  %s5 = inlined_call_operand.vmem [shape: bf16[32,128], index: 5, kind: input, shape index: {}]
  %s6 = inlined_call_operand.vmem [shape: bf16[32,64], index: 6, kind: input, shape index: {}]
  %s7 = inlined_call_operand.vmem [shape: f32[3,128], index: 7, kind: input, shape index: {}]
  %s8 = inlined_call_operand.hbm [shape: f32[1,1,128], index: 8, kind: output, shape index: {}]
  %s9 = sld [smem:[#allocation0]]
  $region42: #{tpu_custom_call.1} parent=0
    _
  %s11 = ssub.s32 1, %s9
  %s12 = scalar_select 0, %s11, %s9
  %13 = sst [smem:[#allocation2]] %s0
  $region1: #{tpu_custom_call.1} parent=0
    #allocation3 [shape = 'u8[512]{0}', space=vmem, size = 0x400, scoped, tag = 'output window, operand 0, single buffered']
    #allocation4 [shape = 's32[1]{0}', space=sflag, size = 0x4, scoped, tag = 'scoped memory for tpu_custom_call.1']
    %14 = vsyncpa [#allocation4], 0
    // Predicated region
    $region2: #{tpu_custom_call.1} parent=1 // pred_check
      _
    $region3: #{tpu_custom_call.1} parent=1 // pred_check_branch
      %16 = sbr.rel (0) target = $region5
    $region4: #{tpu_custom_call.1} parent=1 // pred_region
      _
    $region5: #{tpu_custom_call.1} parent=1 // pred_fallthru
      _
    // Predicated region
    $region6: #{tpu_custom_call.1} parent=1 // pred_check
      _
    $region7: #{tpu_custom_call.1} parent=1 // pred_check_branch
      %18 = sbr.rel (0) target = $region9
    $region8: #{tpu_custom_call.1} parent=1 // pred_region
      _
    $region9: #{tpu_custom_call.1} parent=1 // pred_fallthru
      _
    // Predicated region
    $region10: #{tpu_custom_call.1} parent=1 // pred_check
      _
    $region11: #{tpu_custom_call.1} parent=1 // pred_check_branch
      %20 = sbr.rel (0) target = $region13
    $region12: #{tpu_custom_call.1} parent=1 // pred_region
      _
    $region13: #{tpu_custom_call.1} parent=1 // pred_fallthru
      _
    // Predicated region
    $region14: #{tpu_custom_call.1} parent=1 // pred_check
      _
    $region15: #{tpu_custom_call.1} parent=1 // pred_check_branch
      %22 = sbr.rel (0) target = $region17
    $region16: #{tpu_custom_call.1} parent=1 // pred_region
      _
    $region17: #{tpu_custom_call.1} parent=1 // pred_fallthru
      _
    // Predicated region
    $region18: #{tpu_custom_call.1} parent=1 // pred_check
      _
    $region19: #{tpu_custom_call.1} parent=1 // pred_check_branch
      %24 = sbr.rel (0) target = $region21
    $region20: #{tpu_custom_call.1} parent=1 // pred_region
      _
    $region21: #{tpu_custom_call.1} parent=1 // pred_fallthru
      _
    // Predicated region
    $region22: #{tpu_custom_call.1} parent=1 // pred_check
      _
    $region23: #{tpu_custom_call.1} parent=1 // pred_check_branch
      %26 = sbr.rel (0) target = $region25
    $region24: #{tpu_custom_call.1} parent=1 // pred_region
      _
    $region25: #{tpu_custom_call.1} parent=1 // pred_fallthru
      _
    // Predicated region
    $region26: #{tpu_custom_call.1} parent=1 // pred_check
      _
    $region27: #{tpu_custom_call.1} parent=1 // pred_check_branch
      %28 = sbr.rel (0) target = $region29
    $region28: #{tpu_custom_call.1} parent=1 // pred_region
      _
    $region29: #{tpu_custom_call.1} parent=1 // pred_fallthru
      _
    // Predicated region
    $region30: #{tpu_custom_call.1} parent=1 // pred_check
      _
    $region31: #{tpu_custom_call.1} parent=1 // pred_check_branch
      %30 = sbr.rel (0) target = $region33
    $region32: #{tpu_custom_call.1} parent=1 // pred_region
      _
    $region33: #{tpu_custom_call.1} parent=1 // pred_fallthru
      _
    %v32 = vld [vmem:[%s4] sm:$0xff]
    %v33 = vld [vmem:[%s4 + $0x8] sm:$0xff]
    %v34 = vld [vmem:[%s4 + $0x10] sm:$0xff]
    %v35 = vld [vmem:[%s4 + $0x18] sm:$0xff]
    %v36 = vld [vmem:[%s4 + $0x20] sm:$0xff]
    %v37 = vld [vmem:[%s4 + $0x28] sm:$0xff]
    %v38 = vld [vmem:[%s4 + $0x30] sm:$0xff]
    %v39 = vld [vmem:[%s4 + $0x38] sm:$0xff]
    %v40 = vld [vmem:[%s5] sm:$0xf]
    %v41 = vld [vmem:[%s5 + $0x4] sm:$0xf]
    %v42 = vld [vmem:[%s5 + $0x8] sm:$0xf]
    %v43 = vld [vmem:[%s5 + $0xc] sm:$0xf]
    %v44 = vld [vmem:[%s6] sm:$0xf]
    %v45 = vld [vmem:[%s6 + $0x4] sm:$0xf]
    %v46 = vld [vmem:[%s6 + $0x8] sm:$0xf]
    %v47 = vld [vmem:[%s6 + $0xc] sm:$0xf]
    %v48 = vld [vmem:[%s3] sm:$0xf]
    %v49 = vld [vmem:[%s7] sm:$0x1]
    %v50 = vld [vmem:[%s7 + $0x1] sm:$0x1]
    %v51 = vld [vmem:[%s7 + $0x2] sm:$0x1]
    %v52 = vld [vmem:[%s2] sm:$0x1]
    %v53 = vpack.c.bf16 %v52, %v52
    %s54 = sld [smem:[#allocation2]]
    %s55 = scalar_lea.vmem %s1, %s54
    %v56 = vld [vmem:[%s55] sm:$0x1]
    %v57 = vpack.c.bf16 %v56, %v56
    %59 = vrot.lane.b32.xlu0 %v53, 32
    %v60 = vpop.permute.xlu0 %59
    %vm61 = vcmask 261120
    %v64 = vsel %vm61, %v57, %v60
    %v73 = vunpack.c.l.b16 %v32
    %v74 = vunpack.c.h.b16 %v32
    %v75 = vunpack.c.l.b16 %v33
    %v76 = vunpack.c.h.b16 %v33
    %v77 = vunpack.c.l.b16 %v34
    %v78 = vunpack.c.h.b16 %v34
    %v79 = vunpack.c.l.b16 %v35
    %v80 = vunpack.c.h.b16 %v35
    %v81 = vunpack.c.l.b16 %v36
    %v82 = vunpack.c.h.b16 %v36
    %v83 = vunpack.c.l.b16 %v37
    %v84 = vunpack.c.h.b16 %v37
    %v85 = vunpack.c.l.b16 %v38
    %v86 = vunpack.c.h.b16 %v38
    %v87 = vunpack.c.l.b16 %v39
    %v88 = vunpack.c.h.b16 %v39
    %v89 = vpack.c.b16 %v75, %v73
    %v90 = vpack.c.b16 %v76, %v74
    %v91 = vpack.c.b16 %v79, %v77
    %v92 = vpack.c.b16 %v80, %v78
    %v93 = vpack.c.b16 %v83, %v81
    %v94 = vpack.c.b16 %v84, %v82
    %v95 = vpack.c.b16 %v87, %v85
    %v96 = vpack.c.b16 %v88, %v86
    %vm105 = vcmask 523264
    %v106 = vsel %vm105, %v64, 0
    %108 = vmatprep.subr.bf16.mxu0 0
    %109 = vmatpush1.bf16.msra.mxu0 0
    %110 = vmatprep.subr.bf16.mxu0 0
    %111 = vmatpush1.bf16.msra.mxu0 0
    %112 = vmatprep.subr.bf16.mxu0 0
    %113 = vmatpush1.bf16.msra.mxu0 0
    %114 = vmatprep.subr.bf16.mxu0 0
    %115 = vmatpush1.bf16.msra.mxu0 0
    %116 = vmatprep.subr.bf16.mxu0 %v96
    %117 = vmatpush1.bf16.msra.mxu0 %v95
    %118 = vmatprep.subr.bf16.mxu0 %v94
    %119 = vmatpush1.bf16.msra.mxu0 %v93
    %120 = vmatprep.subr.bf16.mxu0 %v92
    %121 = vmatpush1.bf16.msra.mxu0 %v91
    %122 = vmatprep.subr.bf16.mxu0 %v90
    %123 = vmatpush1.bf16.msra.mxu0 %v89
    %124 = vmatprep.subr.bf16.mxu0 0
    %125 = vmatpush2.bf16.msra.mxu0 0
    %126 = vmatprep.subr.bf16.mxu0 0
    %127 = vmatpush2.bf16.msra.mxu0 0
    %128 = vmatprep.subr.bf16.mxu0 0
    %129 = vmatpush2.bf16.msra.mxu0 0
    %130 = vmatprep.subr.bf16.mxu0 0
    %131 = vmatpush2.bf16.msra.mxu0 0
    %132 = vmatprep.subr.bf16.mxu0 0
    %133 = vmatpush2.bf16.msra.mxu0 0
    %134 = vmatprep.subr.bf16.mxu0 0
    %135 = vmatpush2.bf16.msra.mxu0 0
    %136 = vmatprep.subr.bf16.mxu0 0
    %137 = vmatpush2.bf16.msra.mxu0 0
    %138 = vmatprep.subr.bf16.mxu0 0
    %139 = vmatpush2.bf16.msra.mxu0 0
    %140 = vmatprep.mubr.bf16.mxu0 0
    %141 = vmatmul.mubr.bf16.gmra.mxu0 %v106
    %v142 = vpop.f32.mrf.mxu0
    %v143 = vadd.f32 0.0, %v142
    %v144 = vpop.f32.mrf.mxu0
    %v145 = vadd.f32 0.0, %v144
    %v146 = vpop.f32.mrf.mxu0
    %v147 = vpop.f32.mrf.mxu0
    %148 = vdwg.mxu0
    %v149 = vadd.f32 %v143, %v49
    %vm150 = vcmask 57344
    %v151 = vsel %vm150, %v149, -inf
    %152 = vmax.xlane.f32.xlu0 %v151
    %v153 = vpop.xlane.xlu0 %152
    %v154 = vsub.f32 %v149, %v153
    %v155 = vmul.f32 %v154, 1.442695
    %v156 = vpow.pop %v155
    %v157 = vsel %vm150, %v156, 0.0
    %158 = vadd.xlane.f32.xlu0 %v157
    %v159 = vpop.xlane.xlu0 %158
    %v160 = vrcp.pop %v159
    %v161 = vmul.f32 %v156, %v160
    %v162 = vpack.c.bf16 %v161, %v161
    %vm163 = vcmask 64512
    %v165 = vsel %vm163, %v162, 0
    %vm167 = vcmask 1043456
    %v169 = vsel %vm167, %v48, 0
    %171 = vmatprep.subr.bf16.mxu0 0
    %172 = vmatpush1.bf16.msra.mxu0 0
    %173 = vmatprep.subr.bf16.mxu0 0
    %174 = vmatpush1.bf16.msra.mxu0 0
    %175 = vmatprep.subr.bf16.mxu0 0
    %176 = vmatpush1.bf16.msra.mxu0 0
    %177 = vmatprep.subr.bf16.mxu0 0
    %178 = vmatpush1.bf16.msra.mxu0 0
    %179 = vmatprep.subr.bf16.mxu0 0
    %180 = vmatpush1.bf16.msra.mxu0 0
    %181 = vmatprep.subr.bf16.mxu0 0
    %182 = vmatpush1.bf16.msra.mxu0 0
    %183 = vmatprep.subr.bf16.mxu0 0
    %184 = vmatpush1.bf16.msra.mxu0 0
    %185 = vmatprep.subr.bf16.mxu0 0
    %186 = vmatpush1.bf16.msra.mxu0 %v169
    %187 = vmatprep.subr.bf16.mxu0 0
    %188 = vmatpush2.bf16.msra.mxu0 0
    %189 = vmatprep.subr.bf16.mxu0 0
    %190 = vmatpush2.bf16.msra.mxu0 0
    %191 = vmatprep.subr.bf16.mxu0 0
    %192 = vmatpush2.bf16.msra.mxu0 0
    %193 = vmatprep.subr.bf16.mxu0 0
    %194 = vmatpush2.bf16.msra.mxu0 0
    %195 = vmatprep.subr.bf16.mxu0 0
    %196 = vmatpush2.bf16.msra.mxu0 0
    %197 = vmatprep.subr.bf16.mxu0 0
    %198 = vmatpush2.bf16.msra.mxu0 0
    %199 = vmatprep.subr.bf16.mxu0 0
    %200 = vmatpush2.bf16.msra.mxu0 0
    %201 = vmatprep.subr.bf16.mxu0 0
    %202 = vmatpush2.bf16.msra.mxu0 0
    %203 = vmatprep.mubr.bf16.mxu0 0
    %204 = vmatmul.mubr.bf16.gmra.mxu0 %v165
    %v205 = vpop.f32.mrf.mxu0
    %v206 = vadd.f32 0.0, %v205
    %v207 = vpop.f32.mrf.mxu0
    %v208 = vpop.f32.mrf.mxu0
    %v209 = vpop.f32.mrf.mxu0
    %210 = vdwg.mxu0
    %212 = vrot.lane.b32.xlu0 %v206, 8
    %v213 = vpop.permute.xlu0 %212
    %v215 = vadd.f32 %v143, %v213
    %v216 = vadd.f32 %v215, %v49
    %v217 = vmax.f32 %v216, 0.0
    %v218 = vpack.c.bf16 %v217, %v217
    %220 = vrot.lane.b32.xlu0 %v218, 120
    %v221 = vpop.permute.xlu0 %220
    %v226 = vunpack.c.l.b16 %v40
    %v227 = vunpack.c.l.b16 %v41
    %v228 = vunpack.c.l.b16 %v42
    %v229 = vunpack.c.l.b16 %v43
    %v230 = vpack.c.b16 %v227, %v226
    %v231 = vpack.c.b16 %v229, %v228
    %v235 = vsel %vm61, %v221, 0
    %237 = vmatprep.subr.bf16.mxu0 0
    %238 = vmatpush1.bf16.msra.mxu0 0
    %239 = vmatprep.subr.bf16.mxu0 0
    %240 = vmatpush1.bf16.msra.mxu0 0
    %241 = vmatprep.subr.bf16.mxu0 0
    %242 = vmatpush1.bf16.msra.mxu0 0
    %243 = vmatprep.subr.bf16.mxu0 0
    %244 = vmatpush1.bf16.msra.mxu0 0
    %245 = vmatprep.subr.bf16.mxu0 0
    %246 = vmatpush1.bf16.msra.mxu0 0
    %247 = vmatprep.subr.bf16.mxu0 0
    %248 = vmatpush1.bf16.msra.mxu0 0
    %249 = vmatprep.subr.bf16.mxu0 0
    %250 = vmatpush1.bf16.msra.mxu0 %v231
    %251 = vmatprep.subr.bf16.mxu0 0
    %252 = vmatpush1.bf16.msra.mxu0 %v230
    %253 = vmatprep.subr.bf16.mxu0 0
    %254 = vmatpush2.bf16.msra.mxu0 0
    %255 = vmatprep.subr.bf16.mxu0 0
    %256 = vmatpush2.bf16.msra.mxu0 0
    %257 = vmatprep.subr.bf16.mxu0 0
    %258 = vmatpush2.bf16.msra.mxu0 0
    %259 = vmatprep.subr.bf16.mxu0 0
    %260 = vmatpush2.bf16.msra.mxu0 0
    %261 = vmatprep.subr.bf16.mxu0 0
    %262 = vmatpush2.bf16.msra.mxu0 0
    %263 = vmatprep.subr.bf16.mxu0 0
    %264 = vmatpush2.bf16.msra.mxu0 0
    %265 = vmatprep.subr.bf16.mxu0 0
    %266 = vmatpush2.bf16.msra.mxu0 0
    %267 = vmatprep.subr.bf16.mxu0 0
    %268 = vmatpush2.bf16.msra.mxu0 0
    %269 = vmatprep.mubr.bf16.mxu0 0
    %270 = vmatmul.mubr.bf16.gmra.mxu0 %v235
    %v271 = vpop.f32.mrf.mxu0
    %v272 = vadd.f32 0.0, %v271
    %v273 = vpop.f32.mrf.mxu0
    %v274 = vpop.f32.mrf.mxu0
    %v275 = vpop.f32.mrf.mxu0
    %276 = vdwg.mxu0
    %v277 = vadd.f32 %v272, %v50
    %279 = vrot.lane.b32.xlu0 %v143, 88
    %v280 = vpop.permute.xlu0 %279
    %v282 = vadd.f32 %v277, %v280
    %v283 = vxor.u32 %v282, 2147483648
    %v284 = vmul.f32 %v283, 1.442695
    %v285 = vpow.pop %v284
    %v286 = vadd.f32 %v285, 1.0
    %v287 = vrcp.pop %v286
    %v288 = vmul.f32 1.0, %v287
    %290 = vrot.lane.b32.xlu0 %v50, 8
    %v291 = vpop.permute.xlu0 %290
    %v293 = vadd.f32 %v143, %v291
    %v294 = vadd.f32 %v145, %v291
    %297 = vrot.lane.b32.xlu0 %v293, 24
    %v298 = vpop.permute.xlu0 %297
    %299 = vrot.lane.b32.xlu0 %v294, 24
    %v300 = vpop.permute.xlu0 %299
    %vm301 = vcmask 195584
    %v302 = vsel %vm301, %v298, %v300
    %v304 = vmul.f32 %v288, %v302
    %306 = vrot.lane.b32.xlu0 %v304, 64
    %v307 = vpop.permute.xlu0 %306
    %v309 = vadd.f32 %v277, %v307
    %v310 = vtanh.pop %v309
    %v311 = vsub.f32 1.0, %v288
    %313 = vrot.lane.b32.xlu0 %v310, 96
    %v314 = vpop.permute.xlu0 %313
    %v316 = vmul.f32 %v311, %v314
    %v318 = vlaneseq
    %v319 = vshrl.u32 %v318, 7
    %v320 = vsub.s32 0, %v319
    %v321 = vrot.slane %v52, %v320
    %322 = vrot.lane.b32.xlu0 %v321, 32
    %v323 = vpop.permute.xlu0 %322
    %v325 = vmul.f32 %v288, %v323
    %v326 = vadd.f32 %v316, %v325
    %v327 = vpack.c.bf16 %v326, %v326
    %329 = vrot.lane.b32.xlu0 %v327, 96
    %v330 = vpop.permute.xlu0 %329
    %v335 = vunpack.c.l.b16 %v44
    %v336 = vunpack.c.l.b16 %v45
    %v337 = vunpack.c.l.b16 %v46
    %v338 = vunpack.c.l.b16 %v47
    %v339 = vpack.c.b16 %v336, %v335
    %v340 = vpack.c.b16 %v338, %v337
    %v344 = vsel %vm61, %v330, 0
    %346 = vmatprep.subr.bf16.mxu0 0
    %347 = vmatpush1.bf16.msra.mxu0 0
    %348 = vmatprep.subr.bf16.mxu0 0
    %349 = vmatpush1.bf16.msra.mxu0 0
    %350 = vmatprep.subr.bf16.mxu0 0
    %351 = vmatpush1.bf16.msra.mxu0 0
    %352 = vmatprep.subr.bf16.mxu0 0
    %353 = vmatpush1.bf16.msra.mxu0 0
    %354 = vmatprep.subr.bf16.mxu0 0
    %355 = vmatpush1.bf16.msra.mxu0 0
    %356 = vmatprep.subr.bf16.mxu0 0
    %357 = vmatpush1.bf16.msra.mxu0 0
    %358 = vmatprep.subr.bf16.mxu0 0
    %359 = vmatpush1.bf16.msra.mxu0 %v340
    %360 = vmatprep.subr.bf16.mxu0 0
    %361 = vmatpush1.bf16.msra.mxu0 %v339
    %362 = vmatprep.subr.bf16.mxu0 0
    %363 = vmatpush2.bf16.msra.mxu0 0
    %364 = vmatprep.subr.bf16.mxu0 0
    %365 = vmatpush2.bf16.msra.mxu0 0
    %366 = vmatprep.subr.bf16.mxu0 0
    %367 = vmatpush2.bf16.msra.mxu0 0
    %368 = vmatprep.subr.bf16.mxu0 0
    %369 = vmatpush2.bf16.msra.mxu0 0
    %370 = vmatprep.subr.bf16.mxu0 0
    %371 = vmatpush2.bf16.msra.mxu0 0
    %372 = vmatprep.subr.bf16.mxu0 0
    %373 = vmatpush2.bf16.msra.mxu0 0
    %374 = vmatprep.subr.bf16.mxu0 0
    %375 = vmatpush2.bf16.msra.mxu0 0
    %376 = vmatprep.subr.bf16.mxu0 0
    %377 = vmatpush2.bf16.msra.mxu0 0
    %378 = vmatprep.mubr.bf16.mxu0 0
    %379 = vmatmul.mubr.bf16.gmra.mxu0 %v344
    %v380 = vpop.f32.mrf.mxu0
    %v381 = vadd.f32 %v51, %v380
    %v382 = vpop.f32.mrf.mxu0
    %v383 = vpop.f32.mrf.mxu0
    %v384 = vpop.f32.mrf.mxu0
    %385 = vdwg.mxu0
    %vm386 = vcmask 516096
    %v387 = vsel %vm386, %v381, -inf
    %388 = vmax.xlane.f32.xlu0 %v387
    %v389 = vpop.xlane.xlu0 %388
    %v390 = vsub.f32 %v381, %v389
    %v391 = vmul.f32 %v390, 1.442695
    %v392 = vpow.pop %v391
    %v393 = vsel %vm386, %v392, 0.0
    %394 = vadd.xlane.f32.xlu0 %v393
    %v395 = vpop.xlane.xlu0 %394
    %v396 = vlog2.pop %v395
    %v397 = vmul.f32 %v396, 0.6931472
    %v398 = vadd.f32 %v397, %v389
    %v399 = vsub.f32 %v381, %v398
    %401 = vrot.lane.b32.xlu0 %v326, 32
    %v402 = vpop.permute.xlu0 %401
    %405 = vrot.lane.b32.xlu0 %v161, 96
    %v406 = vpop.permute.xlu0 %405
    %v408 = vsel %vm105, %v399, %v402
    %vm409 = vcmask 785408
    %v410 = vsel %vm409, %v408, %v406
    %vm411 = vcmask 850944
    %v412 = vsel %vm411, %v410, 0.0
    %413 = vst [vmem:[#allocation3] sm:$0x1] %v412
    // Predicated region
    $region34: #{tpu_custom_call.1} parent=1 // pred_check
      _
    $region35: #{tpu_custom_call.1} parent=1 // pred_check_branch
      %415 = sbr.rel (0) target = $region37
    $region36: #{tpu_custom_call.1} parent=1 // pred_region
      %s417 = ssub.s32 16, 16
      %418 = vsyncadd [#allocation4], %s417
      %s420 = sshll.u32 [#allocation3], 4
      %s421 = int_to_ptr.vmem [resolvable:$true] %s420
      %423 = dma.vmem_to_hbm [thread:$0]  %s421, 16, %s8, [#allocation4]
    $region37: #{tpu_custom_call.1} parent=1 // pred_fallthru
      _
    // Predicated region
    $region38: #{tpu_custom_call.1} parent=1 // pred_check
      _
    $region39: #{tpu_custom_call.1} parent=1 // pred_check_branch
      %425 = sbr.rel (0) target = $region41
    $region40: #{tpu_custom_call.1} parent=1 // pred_region
      %426 = dma.done [#allocation4], 16
    $region41: #{tpu_custom_call.1} parent=1 // pred_fallthru
      _
    %427 = vsyncpa [#allocation4], 1

</llo_original>
